<compile_context>
chip_gen: v7x
topology: tpu7x:2x2x1
jax: 0.10.0
libtpu: 0.0.40
codegen_flags: <defaults>
</compile_context>

<pallas_src>
import jax
import jax.numpy as jnp
from jax.experimental import pallas as pl
from jax.experimental.pallas import tpu as pltpu

_LANE = 128
_MAX_TB = 16 * 1024  # ~640 KiB useful x data per tile (~1 MiB lane-padded)


def net_kernel(x_ref, w_ref, b_ref, o_ref):
    # x: [10, tb]  feature-major (batch on the lane axis)   (VMEM)
    # w: [10, 1]   fused effective weight column            (VMEM)
    # b: [1, 1]    fused effective bias scalar              (SMEM)
    # o: [1, tb]   lane-dense output row                    (VMEM)
    x = x_ref[...]
    w = w_ref[...]            # broadcasts across the lane (batch) axis
    b = b_ref[0, 0]
    # VPU multiply + cheap sublane reduce over the 10 features; no MXU
    # round-trip, no cross-lane XLU reduce, full unmasked lane-row store.
    y = jnp.sum(x * w, axis=0, keepdims=True) + b          # (1, tb)
    o_ref[...] = y.astype(o_ref.dtype)


def _cdiv(a, b):
    return -(-a // b)


def _select_batch_tile(B):
    """Lane-axis tile size for the batch dimension (feature-major layout)."""
    if B <= _LANE:
        # Tiny batch: one full (unpadded) block; tiling/padding not worth it.
        return B
    # Multiple of 128 lanes; aim for >= 2 grid blocks (megacore sharding on
    # v7x) and cap at 16K so the double-buffered x tile stays ~2 MiB of VMEM.
    half = _cdiv(B, 2 * _LANE) * _LANE      # ceil(B/2) rounded up to lanes
    return min(_MAX_TB, half)


def net_forward(x, w1, b1, w2, b2):
    """x: [B, 10] f32. w1: [1, 10], b1: [1], w2: [1, 1], b2: [1] (PyTorch layout).

    Implements y = fc2(fc1(x)) via algebraic fusion of the two linear layers.
    In a real training loop (w_eff, b_eff) would be recomputed once per
    parameter update rather than per forward call; here it is cheap scalar
    math inside the jitted wrapper.
    """
    B, IN = x.shape

    # --- Algebraic fusion of the two linear layers ------------------------
    w2_s = w2[0, 0]
    w_eff = (w2_s * w1).reshape(IN, 1).astype(jnp.float32)       # [10, 1]
    b_eff = (w2_s * b1 + b2).reshape(1, 1).astype(jnp.float32)   # [1, 1]

    # --- Feature-major relayout: batch onto the lane axis -----------------
    x_t = x.astype(jnp.float32).T                                # [10, B]

    tb = _select_batch_tile(B)
    Bp = _cdiv(B, tb) * tb
    if Bp != B:
        # Ragged batch: pad the lane axis instead of emitting one giant
        # un-pipelined block; padded outputs are sliced off below.
        x_t = jnp.pad(x_t, ((0, 0), (0, Bp - B)))
    grid = (Bp // tb,)

    out_row = pl.pallas_call(
        net_kernel,
        out_shape=jax.ShapeDtypeStruct((1, Bp), jnp.float32),
        grid=grid,
        in_specs=[
            pl.BlockSpec((IN, tb), lambda i: (0, i)),            # x tile
            pl.BlockSpec((IN, 1), lambda i: (0, 0)),             # fused weight col
            pl.BlockSpec(memory_space=pltpu.MemorySpace.SMEM),   # fused bias
        ],
        out_specs=pl.BlockSpec((1, tb), lambda i: (0, i)),       # lane-dense row
        compiler_params=pltpu.CompilerParams(
            dimension_semantics=("parallel",)),
    )(x_t, w_eff, b_eff)

    # (1, Bp) -> (B, 1); this reshape/slice is layout-free (same flat order).
    return out_row[:, :B].reshape(B, 1)


net_forward_jit = jax.jit(net_forward)


if __name__ == "__main__":
    key = jax.random.PRNGKey(0)
    k_x, k_w1, k_b1, k_w2, k_b2 = jax.random.split(key, 5)

    B, IN = 16, 10

    x = jax.random.normal(k_x, (B, IN), dtype=jnp.float32)

    # Deterministic PyTorch-style init: U(-1/sqrt(fan_in), 1/sqrt(fan_in))
    bound1 = 1.0 / jnp.sqrt(jnp.float32(IN))
    w1 = jax.random.uniform(k_w1, (1, IN), minval=-bound1, maxval=bound1,
                            dtype=jnp.float32)
    b1 = jax.random.uniform(k_b1, (1,), minval=-bound1, maxval=bound1,
                            dtype=jnp.float32)
    bound2 = 1.0
    w2 = jax.random.uniform(k_w2, (1, 1), minval=-bound2, maxval=bound2,
                            dtype=jnp.float32)
    b2 = jax.random.uniform(k_b2, (1,), minval=-bound2, maxval=bound2,
                            dtype=jnp.float32)

    out = net_forward_jit(x, w1, b1, w2, b2)
    out = jax.block_until_ready(out)

    # Reference check in plain JAX (fc2(fc1(x))).
    ref = (x @ w1.T + b1) @ w2.T + b2
    assert out.shape == (B, 1)
    assert jnp.allclose(out, ref, atol=1e-5, rtol=1e-5)

    print("KERNEL_OK")
</pallas_src>

<mosaic_0001>
module attributes {stable_mosaic.version = 11 : i64} {
  func.func @net_kernel(%arg0: i32, %arg1: memref<10x16xf32, #tpu.memory_space<vmem>>, %arg2: memref<10x1xf32, #tpu.memory_space<vmem>>, %arg3: memref<1x1xf32, #tpu.memory_space<smem>>, %arg4: memref<1x16xf32, #tpu.memory_space<vmem>>) attributes {dimension_semantics = [#tpu.dimension_semantics<parallel>], iteration_bounds = array<i64: 1>, scalar_prefetch = 0 : i64, scratch_operands = 0 : i64, tpu.core_type = #tpu.core_type<tc>, window_params = [{transform_indices = @transform_0, window_bounds = array<i64: 10, 16>}, {pipeline_mode = #tpu.pipeline_mode<synchronous>, transform_indices = @transform_1, window_bounds = array<i64: 10, 1>}, {transform_indices = @transform_2, window_bounds = array<i64: 1, 1>}, {transform_indices = @transform_3, window_bounds = array<i64: 1, 16>}]} {
    %c0 = arith.constant 0 : index
    %c0_0 = arith.constant 0 : index
    %0 = vector.load %arg1[%c0, %c0_0] : memref<10x16xf32, #tpu.memory_space<vmem>>, vector<10x16xf32>
    %c0_1 = arith.constant 0 : index
    %c0_2 = arith.constant 0 : index
    %1 = vector.load %arg2[%c0_1, %c0_2] : memref<10x1xf32, #tpu.memory_space<vmem>>, vector<10x1xf32>
    %c0_3 = arith.constant 0 : index
    %c0_4 = arith.constant 0 : index
    %2 = memref.load %arg3[%c0_3, %c0_4] : memref<1x1xf32, #tpu.memory_space<smem>>
    %3 = vector.broadcast %1 : vector<10x1xf32> to vector<10x16xf32>
    %4 = arith.mulf %0, %3 : vector<10x16xf32>
    %cst = arith.constant dense<0.000000e+00> : vector<16xf32>
    %5 = vector.multi_reduction <add>, %4, %cst [0] : vector<10x16xf32> to vector<16xf32>
    %6 = vector.shape_cast %5 : vector<16xf32> to vector<1x16xf32>
    %7 = vector.broadcast %2 : f32 to vector<1x16xf32>
    %8 = arith.addf %6, %7 : vector<1x16xf32>
    %c0_5 = arith.constant 0 : index
    %c0_6 = arith.constant 0 : index
    %9 = vector.load %arg4[%c0_5, %c0_6] : memref<1x16xf32, #tpu.memory_space<vmem>>, vector<1x16xf32>
    tpu.vector_store %arg4[%c0_5, %c0_6], %8 {strides = array<i32>} : memref<1x16xf32, #tpu.memory_space<vmem>>, vector<1x16xf32>,
    return
  }
  func.func @transform_0(%arg0: i32) -> (i32, i32) {
    %c0_i32 = arith.constant 0 : i32
    %c0_i32_0 = arith.constant 0 : i32
    return %c0_i32, %arg0 : i32, i32
  }
  func.func @transform_1(%arg0: i32) -> (i32, i32) {
    %c0_i32 = arith.constant 0 : i32
    %c0_i32_0 = arith.constant 0 : i32
    %c0_i32_1 = arith.constant 0 : i32
    return %c0_i32, %c0_i32_0 : i32, i32
  }
  func.func @transform_2(%arg0: i32) -> (i32, i32) {
    %c0_i32 = arith.constant 0 : i32
    %c0_i32_0 = arith.constant 0 : i32
    %c0_i32_1 = arith.constant 0 : i32
    return %c0_i32, %c0_i32_0 : i32, i32
  }
  func.func @transform_3(%arg0: i32) -> (i32, i32) {
    %c0_i32 = arith.constant 0 : i32
    %c0_i32_0 = arith.constant 0 : i32
    return %c0_i32, %arg0 : i32, i32
  }
}

</mosaic_0001>

<llo_original>
// kernel: net_forward.1
$region0: #{net_forward.1}
  #allocation0 [shape = 'u32[]', space=smem, size = 0x4, offset = 0x4, fixed_abs, tag = 'smem constant byte address 0x4 - core index']
  #allocation1 [shape = 'u32[144,128]{1,0:T(1,128)}', space=vmem, size = 0x12000, scoped, tag = 'internal scratch']
  #allocation2 [shape = 'f32[1,1]{1,0:T(1,128)S(6)}', space=smem, size = 0x200, scoped, tag = 'scoped memory for net_forward.1']
  %s0 = inlined_call_operand.vmem [shape: f32[10,16], index: 0, kind: input, shape index: {}]
  %s1 = inlined_call_operand.vmem [shape: f32[10,1], index: 1, kind: input, shape index: {}]
  %s2 = inlined_call_operand.<no memory space> [shape: f32[1,1], index: 2, kind: input, shape index: {}]
  %s3 = inlined_call_operand.hbm [shape: f32[1,16], index: 3, kind: output, shape index: {}]
  %s4 = sld [smem:[#allocation0]]
  $region22: #{net_forward.1} parent=0
    _
  %s6 = ssub.s32 1, %s4
  %s7 = scalar_select 0, %s6, %s4
  %8 = sst [smem:[#allocation2]] %s2
  $region1: #{net_forward.1} parent=0
    #allocation3 [shape = 'u8[512]{0}', space=vmem, size = 0x400, scoped, tag = 'output window, operand 0, single buffered']
    #allocation4 [shape = 's32[1]{0}', space=sflag, size = 0x4, scoped, tag = 'scoped memory for net_forward.1']
    %9 = vsyncpa [#allocation4], 0
    // Predicated region
    $region2: #{net_forward.1} parent=1 // pred_check
      _
    $region3: #{net_forward.1} parent=1 // pred_check_branch
      %11 = sbr.rel (0) target = $region5
    $region4: #{net_forward.1} parent=1 // pred_region
      _
    $region5: #{net_forward.1} parent=1 // pred_fallthru
      _
    // Predicated region
    $region6: #{net_forward.1} parent=1 // pred_check
      _
    $region7: #{net_forward.1} parent=1 // pred_check_branch
      %13 = sbr.rel (0) target = $region9
    $region8: #{net_forward.1} parent=1 // pred_region
      _
    $region9: #{net_forward.1} parent=1 // pred_fallthru
      _
    // Predicated region
    $region10: #{net_forward.1} parent=1 // pred_check
      _
    $region11: #{net_forward.1} parent=1 // pred_check_branch
      %15 = sbr.rel (0) target = $region13
    $region12: #{net_forward.1} parent=1 // pred_region
      _
    $region13: #{net_forward.1} parent=1 // pred_fallthru
      _
    %v16 = vld [vmem:[%s0] sm:$0xff]
    %v17 = vld [vmem:[%s0 + $0x8] sm:$0x3]
    %v18 = vld [vmem:[%s1] sm:$0xff]
    %v19 = vld [vmem:[%s1 + $0x8] sm:$0x3]
    %s20 = sld [smem:[#allocation2]]
    %22 = vset.pattern.permute.xlu0 0
    %23 = vperm.xlu0 %22, %v18
    %v24 = vpop.permute.xlu0 %23
    %27 = vset.pattern.permute.xlu0 0
    %28 = vperm.xlu0 %27, %v19
    %v29 = vpop.permute.xlu0 %28
    %v31 = vmul.f32 %v16, %v24
    %v32 = vmul.f32 %v17, %v29
    %vm33 = vcmask 130048
    %v34 = vsel %vm33, %v31, 0.0
    %vm35 = vcmask 123904
    %v36 = vsel %vm35, %v32, 0.0
    %v37 = vadd.f32 %v34, %v36
    %v38 = vrot.slane %v37, 4
    %v39 = vadd.f32 %v37, %v38
    %v40 = vrot.slane %v39, 2
    %v41 = vadd.f32 %v39, %v40
    %v42 = vrot.slane %v41, 1
    %v43 = vadd.f32 %v41, %v42
    %v44 = vstv %s20
    %v45 = vadd.f32 %v43, %v44
    %vm46 = vcmask 122880
    %47 = vst.msk [vmem:[#allocation3] sm:$0x1] %vm46, %v45
    // Predicated region
    $region14: #{net_forward.1} parent=1 // pred_check
      _
    $region15: #{net_forward.1} parent=1 // pred_check_branch
      %49 = sbr.rel (0) target = $region17
    $region16: #{net_forward.1} parent=1 // pred_region
      %s51 = ssub.s32 16, 16
      %52 = vsyncadd [#allocation4], %s51
      %s54 = sshll.u32 [#allocation3], 4
      %s55 = int_to_ptr.vmem [resolvable:$true] %s54
      %57 = dma.vmem_to_hbm [thread:$0]  %s55, 16, %s3, [#allocation4]
    $region17: #{net_forward.1} parent=1 // pred_fallthru
      _
    // Predicated region
    $region18: #{net_forward.1} parent=1 // pred_check
      _
    $region19: #{net_forward.1} parent=1 // pred_check_branch
      %59 = sbr.rel (0) target = $region21
    $region20: #{net_forward.1} parent=1 // pred_region
      %60 = dma.done [#allocation4], 16
    $region21: #{net_forward.1} parent=1 // pred_fallthru
      _
    %61 = vsyncpa [#allocation4], 1

</llo_original>
